<compile_context>
chip_gen: v5e
topology: v5e:2x2
jax: 0.10.0
libtpu: 0.0.40
codegen_flags: <defaults>
</compile_context>

<pallas_src>
import functools

import jax
import jax.numpy as jnp
from jax import lax
from jax.experimental import pallas as pl
from jax.experimental.pallas import tpu as pltpu

LANE = 128


def _round_up(v, m):
    return -(-v // m) * m


def _vmem_capacity_bytes():
    try:
        info = pltpu.get_tpu_info()
        cap = getattr(info, "vmem_capacity_bytes", None)
        if cap:
            return int(cap)
    except Exception:
        pass
    return 64 * 2 ** 20          # conservative: v7x per-TensorCore VMEM


def _resblock_kernel(*refs, stride, lout, has_proj):
    """One grid step = b_tile batch elements folded into the matmul M dimension.

    refs (has_proj=True ): x_ref, w1_ref, w2_ref, ws_ref, bn_ref, o_ref, pad2_ref
    refs (has_proj=False): x_ref, w1_ref, w2_ref,         bn_ref, o_ref, pad2_ref

    x_ref : stride==1 -> (B, Lp+2, Cin_p)  zero-padded input (halo 1 + Lout pad)
            stride>1  -> (B, Lp, 3*Cin_p)  pre-gathered (subsampled) conv1 taps
    w1_ref: (3*Cin_p,  Cout_p)   conv1 taps stacked along K
    w2_ref: (3*Cout_p, Cout_p)   conv2 taps stacked along K
    ws_ref: (Cin_p, Cout_p)      shortcut 1x1 projection (only if has_proj)
    bn_ref: (8, Cout_p)          rows: s1, b1, s2, b2, ss, bs, 0, 0   (f32)
    o_ref : (B, Lp, Cout_p)      bf16 output
    pad2_ref: (B, Lp+2, Cout_p)  bf16 VMEM scratch for the conv2 halo
    """
    if has_proj:
        x_ref, w1_ref, w2_ref, ws_ref, bn_ref, o_ref, pad2_ref = refs
    else:
        x_ref, w1_ref, w2_ref, bn_ref, o_ref, pad2_ref = refs
        ws_ref = None

    B, Lp, Cp = o_ref.shape
    M = B * Lp
    f32 = jnp.float32

    s1 = bn_ref[0:1, :]
    b1 = bn_ref[1:2, :]
    s2 = bn_ref[2:3, :]
    b2 = bn_ref[3:4, :]

    # ---- conv1 -------------------------------------------------------------
    if stride == 1:
        # Three accumulating MXU dots -- no (M, 3*Cin_p) im2col materialisation.
        cin_p = x_ref.shape[2]
        t0 = x_ref[:, 0:Lp, :].reshape(M, cin_p)
        t1 = x_ref[:, 1:Lp + 1, :].reshape(M, cin_p)
        t2 = x_ref[:, 2:Lp + 2, :].reshape(M, cin_p)
        z1 = jnp.dot(t0, w1_ref[0:cin_p, :], preferred_element_type=f32)
        z1 = z1 + jnp.dot(t1, w1_ref[cin_p:2 * cin_p, :], preferred_element_type=f32)
        z1 = z1 + jnp.dot(t2, w1_ref[2 * cin_p:3 * cin_p, :], preferred_element_type=f32)
        sc_in = t1                                    # centre tap = x itself
    else:
        # Taps already gathered contiguously by the wrapper -> one K=3*Cin_p dot.
        cin3 = x_ref.shape[2]
        cin_p = cin3 // 3
        lhs1 = x_ref[...].reshape(M, cin3)
        z1 = jnp.dot(lhs1, w1_ref[...], preferred_element_type=f32)
        sc_in = lhs1[:, cin_p:2 * cin_p]              # centre-tap rows (lane-aligned)

    h = jnp.maximum(z1 * s1 + b1, 0.0)                # BN1 + ReLU (f32)
    hb = h.astype(pad2_ref.dtype)                     # (M, Cp) bf16 MXU feed

    # ---- conv2 (k=3, stride 1): halo via VMEM scratch, accumulating dots ----
    pad2_ref[:, 1:Lp + 1, :] = hb.reshape(B, Lp, Cp)
    pad2_ref[:, 0:1, :] = jnp.zeros((B, 1, Cp), pad2_ref.dtype)
    # Zero the trailing halo AND the Lout-padding rows (their h values are
    # garbage = relu(b1) from zero-padded inputs) so they cannot leak into the
    # last real output row through the +1 tap.
    pad2_ref[:, lout + 1:, :] = jnp.zeros((B, Lp + 1 - lout, Cp), pad2_ref.dtype)

    z2 = jnp.dot(hb, w2_ref[Cp:2 * Cp, :], preferred_element_type=f32)       # centre
    z2 = z2 + jnp.dot(pad2_ref[:, 0:Lp, :].reshape(M, Cp),
                      w2_ref[0:Cp, :], preferred_element_type=f32)           # -1 tap
    z2 = z2 + jnp.dot(pad2_ref[:, 2:Lp + 2, :].reshape(M, Cp),
                      w2_ref[2 * Cp:3 * Cp, :], preferred_element_type=f32)  # +1 tap
    out2 = z2 * s2 + b2                               # BN2 (f32)

    # ---- shortcut ------------------------------------------------------------
    if has_proj:
        ss = bn_ref[4:5, :]
        bs = bn_ref[5:6, :]
        sc = jnp.dot(sc_in, ws_ref[...], preferred_element_type=f32) * ss + bs
    else:
        sc = sc_in.astype(f32)                        # identity (Cin_p == Cout_p)

    o_ref[...] = jnp.maximum(out2 + sc, 0.0).astype(o_ref.dtype).reshape(B, Lp, Cp)


def _bn_scale_shift(bn, eps=1e-5):
    scale = bn["gamma"] / jnp.sqrt(bn["var"] + eps)
    shift = bn["beta"] - bn["mean"] * scale
    return scale.astype(jnp.float32), shift.astype(jnp.float32)


def residual_block_1d(x_ncl, params, stride):
    """x_ncl: (N, Cin, L) like PyTorch.  Returns (N, Cout, Lout) in x's dtype."""
    N, Cin, L = x_ncl.shape
    Cout = params["conv1_w"].shape[0]
    has_proj = bool(params["has_proj"])

    Lout = (L - 1) // stride + 1            # PyTorch: k=3, pad=1 (shortcut k=1, pad=0)
    Lp = _round_up(Lout, 8)                 # sublane-aligned reshapes, unmasked stores
    cin_p = _round_up(Cin, LANE)            # lane-dense channel padding
    cout_p = _round_up(Cout, LANE)

    # ---- per-generation VMEM budget -> batch tile (M target ~1024 rows) ------
    vmem_cap = _vmem_capacity_bytes()
    w_bytes = 2 * ((3 * cin_p * cout_p + 3 * cout_p * cout_p
                    + (cin_p * cout_p if has_proj else 0)) * 2 + 8 * cout_p * 4)
    cin_eff = cin_p if stride == 1 else 3 * cin_p
    x_rows = (Lp + 2) if stride == 1 else Lp
    per_b = (2 * x_rows * cin_eff * 2            # x block (bf16, double-buffered)
             + 2 * Lp * cout_p * 2               # out block (bf16, double-buffered)
             + (Lp + 2) * cout_p * 2             # conv2 halo scratch (bf16)
             + Lp * (8 * cin_p + 28 * cout_p))   # in-kernel temporaries (z1,h,hb,z2,sc)
    b_cap = max(1, (int(vmem_cap * 0.7) - w_bytes) // per_b)
    b_tile = int(max(1, min(N, b_cap, max(1, 1024 // Lp))))
    # v7x dual-TensorCore: prefer >=2 grid steps when M stays large enough.
    if b_tile >= N and N > 1 and ((N + 1) // 2) * Lp >= 512:
        b_tile = (N + 1) // 2
    n_pad = _round_up(N, b_tile)

    need = w_bytes + b_tile * per_b
    vmem_limit = int(min(int(vmem_cap * 0.9), 100 * 2 ** 20,
                         max(need + (8 << 20), 32 << 20)))

    # ---- input prep: one transpose + pad (batch, halo, Lout-pad, channels) ----
    # TODO(synk): upstream layers should emit NLC bf16 directly to avoid this
    # extra HBM round trip (XLA fuses transpose+convert+pad into one copy here).
    x_nlc = jnp.transpose(x_ncl, (0, 2, 1)).astype(jnp.bfloat16)
    if stride == 1:
        x_in = jnp.pad(x_nlc, ((0, n_pad - N), (1, Lp + 1 - L), (0, cin_p - Cin)))
        x_block = (b_tile, Lp + 2, cin_p)                 # (n_pad, Lp+2, Cin_p)
    else:
        # TODO(synk): replace this wrapper pre-gather with in-kernel strided
        # pl.ds reads to keep x traffic at one DMA of the original tensor.
        xpad = jnp.pad(x_nlc, ((0, n_pad - N), (1, 1), (0, cin_p - Cin)))
        taps = [xpad[:, k:k + stride * Lout:stride, :] for k in range(3)]
        x_in = jnp.pad(jnp.concatenate(taps, axis=-1),
                       ((0, 0), (0, Lp - Lout), (0, 0)))  # (n_pad, Lp, 3*Cin_p)
        x_block = (b_tile, Lp, 3 * cin_p)

    # ---- weights: 3 taps stacked along K, channel-padded, bf16 ----------------
    def pad2d(w, rows, cols):
        return jnp.pad(w, ((0, rows - w.shape[0]), (0, cols - w.shape[1])))

    w1 = jnp.concatenate([pad2d(params["conv1_w"][:, :, k].T, cin_p, cout_p)
                          for k in range(3)], axis=0).astype(jnp.bfloat16)
    w2 = jnp.concatenate([pad2d(params["conv2_w"][:, :, k].T, cout_p, cout_p)
                          for k in range(3)], axis=0).astype(jnp.bfloat16)

    # ---- BN params coalesced into a single (8, Cout_p) f32 block --------------
    s1, b1 = _bn_scale_shift(params["bn1"])
    s2, b2 = _bn_scale_shift(params["bn2"])
    if has_proj:
        ss, bs = _bn_scale_shift(params["bns"])
    else:
        ss = jnp.ones((Cout,), jnp.float32)
        bs = jnp.zeros((Cout,), jnp.float32)
    bn_all = jnp.zeros((8, cout_p), jnp.float32)
    bn_all = (bn_all.at[0, :Cout].set(s1).at[1, :Cout].set(b1)
                    .at[2, :Cout].set(s2).at[3, :Cout].set(b2)
                    .at[4, :Cout].set(ss).at[5, :Cout].set(bs))

    inputs = [x_in, w1, w2]
    # Weight / BN index maps are constant -> the pipeline only DMAs them once.
    in_specs = [
        pl.BlockSpec(x_block, lambda n: (n, 0, 0)),
        pl.BlockSpec((3 * cin_p, cout_p), lambda n: (0, 0)),
        pl.BlockSpec((3 * cout_p, cout_p), lambda n: (0, 0)),
    ]
    if has_proj:
        ws = pad2d(params["convs_w"][:, :, 0].T, cin_p, cout_p).astype(jnp.bfloat16)
        inputs.append(ws)
        in_specs.append(pl.BlockSpec((cin_p, cout_p), lambda n: (0, 0)))
    inputs.append(bn_all)
    in_specs.append(pl.BlockSpec((8, cout_p), lambda n: (0, 0)))

    flops = 2 * n_pad * Lp * cout_p * (3 * cin_p + 3 * cout_p
                                       + (cin_p if has_proj else 0))
    bytes_accessed = (int(x_in.size) * 2 + int(w1.size) * 2 + int(w2.size) * 2
                      + int(bn_all.size) * 4 + n_pad * Lp * cout_p * 2
                      + (cin_p * cout_p * 2 if has_proj else 0))

    kern = functools.partial(_resblock_kernel, stride=stride, lout=Lout,
                             has_proj=has_proj)
    out = pl.pallas_call(
        kern,
        out_shape=jax.ShapeDtypeStruct((n_pad, Lp, cout_p), jnp.bfloat16),
        grid_spec=pltpu.PrefetchScalarGridSpec(
            num_scalar_prefetch=0,
            grid=(n_pad // b_tile,),
            in_specs=in_specs,
            out_specs=pl.BlockSpec((b_tile, Lp, cout_p), lambda n: (n, 0, 0)),
            scratch_shapes=[pltpu.VMEM((b_tile, Lp + 2, cout_p), jnp.bfloat16)],
        ),
        compiler_params=pltpu.CompilerParams(
            dimension_semantics=("parallel",),
            vmem_limit_bytes=vmem_limit),
        cost_estimate=pl.CostEstimate(flops=int(flops), transcendentals=0,
                                      bytes_accessed=int(bytes_accessed)),
    )(*inputs)

    # Drop batch / Lout / lane padding; cast back is fused with the NLC->NCL transpose.
    out = out[:N, :Lout, :Cout]
    return jnp.transpose(out, (0, 2, 1)).astype(x_ncl.dtype)


# ---------------- parameter init + pure-JAX reference ----------------

def init_params(key, cin, cout, stride):
    keys = jax.random.split(key, 6)

    def bn_init(k, c):
        a, b, c_, d = jax.random.split(k, 4)
        return dict(gamma=1.0 + 0.1 * jax.random.normal(a, (c,), jnp.float32),
                    beta=0.1 * jax.random.normal(b, (c,), jnp.float32),
                    mean=0.1 * jax.random.normal(c_, (c,), jnp.float32),
                    var=jnp.abs(jax.random.normal(d, (c,), jnp.float32)) + 0.5)

    p = dict(
        conv1_w=0.1 * jax.random.normal(keys[0], (cout, cin, 3), jnp.float32),
        conv2_w=0.1 * jax.random.normal(keys[1], (cout, cout, 3), jnp.float32),
        bn1=bn_init(keys[2], cout),
        bn2=bn_init(keys[3], cout),
        has_proj=(stride != 1 or cin != cout),
    )
    if p["has_proj"]:
        p["convs_w"] = 0.1 * jax.random.normal(keys[4], (cout, cin, 1), jnp.float32)
        p["bns"] = bn_init(keys[5], cout)
    return p


def reference(x, params, stride, eps=1e-5):
    def conv1d(x, w, s, pad):
        return lax.conv_general_dilated(x, w, (s,), [(pad, pad)],
                                        dimension_numbers=("NCH", "OIH", "NCH"))

    def bn(x, b):
        return ((x - b["mean"][None, :, None])
                / jnp.sqrt(b["var"][None, :, None] + eps)
                * b["gamma"][None, :, None] + b["beta"][None, :, None])

    out = jax.nn.relu(bn(conv1d(x, params["conv1_w"], stride, 1), params["bn1"]))
    out = bn(conv1d(out, params["conv2_w"], 1, 1), params["bn2"])
    if params["has_proj"]:
        sc = bn(conv1d(x, params["convs_w"], stride, 0), params["bns"])
    else:
        sc = x
    return jax.nn.relu(out + sc)


if __name__ == "__main__":
    key = jax.random.PRNGKey(0)
    kx1, kx2, kx3, kp1, kp2, kp3 = jax.random.split(key, 6)

    # Case 1: projection shortcut (in=4 -> out=8, stride=2), L=16
    x1 = jax.random.normal(kx1, (2, 4, 16), jnp.float32)
    p1 = init_params(kp1, 4, 8, stride=2)
    y1 = jax.block_until_ready(residual_block_1d(x1, p1, stride=2))
    r1 = reference(x1, p1, stride=2)
    assert y1.shape == r1.shape == (2, 8, 8)
    # bf16 MXU feeds + bf16 output store -> loosened tolerance vs f32 reference
    assert jnp.allclose(y1, r1, rtol=5e-2, atol=5e-2), \
        f"max abs err case1: {jnp.max(jnp.abs(y1 - r1))}"

    # Case 2: identity shortcut (in=out=8, stride=1), L=16
    x2 = jax.random.normal(kx2, (2, 8, 16), jnp.float32)
    p2 = init_params(kp2, 8, 8, stride=1)
    y2 = jax.block_until_ready(residual_block_1d(x2, p2, stride=1))
    r2 = reference(x2, p2, stride=1)
    assert y2.shape == r2.shape == (2, 8, 16)
    assert jnp.allclose(y2, r2, rtol=5e-2, atol=5e-2), \
        f"max abs err case2: {jnp.max(jnp.abs(y2 - r2))}"

    # Case 3: odd L + Lout not a multiple of 8 (in=6 -> out=10, stride=2), L=21
    x3 = jax.random.normal(kx3, (3, 6, 21), jnp.float32)
    p3 = init_params(kp3, 6, 10, stride=2)
    y3 = jax.block_until_ready(residual_block_1d(x3, p3, stride=2))
    r3 = reference(x3, p3, stride=2)
    assert y3.shape == r3.shape == (3, 10, 11)
    assert jnp.allclose(y3, r3, rtol=5e-2, atol=5e-2), \
        f"max abs err case3: {jnp.max(jnp.abs(y3 - r3))}"

    print("KERNEL_OK")
</pallas_src>

<mosaic_0001>
module attributes {stable_mosaic.version = 11 : i64} {
  func.func @_resblock_kernel(%arg0: i32, %arg1: memref<2x8x384xbf16, #tpu.memory_space<vmem>>, %arg2: memref<384x128xbf16, #tpu.memory_space<vmem>>, %arg3: memref<384x128xbf16, #tpu.memory_space<vmem>>, %arg4: memref<128x128xbf16, #tpu.memory_space<vmem>>, %arg5: memref<8x128xf32, #tpu.memory_space<vmem>>, %arg6: memref<2x8x128xbf16, #tpu.memory_space<vmem>>, %arg7: memref<2x10x128xbf16, #tpu.memory_space<vmem>>) attributes {dimension_semantics = [#tpu.dimension_semantics<parallel>], iteration_bounds = array<i64: 1>, scalar_prefetch = 0 : i64, scratch_operands = 1 : i64, tpu.core_type = #tpu.core_type<tc>, window_params = [{transform_indices = @transform_0, window_bounds = array<i64: 2, 8, 384>}, {pipeline_mode = #tpu.pipeline_mode<synchronous>, transform_indices = @transform_1, window_bounds = array<i64: 384, 128>}, {pipeline_mode = #tpu.pipeline_mode<synchronous>, transform_indices = @transform_2, window_bounds = array<i64: 384, 128>}, {pipeline_mode = #tpu.pipeline_mode<synchronous>, transform_indices = @transform_3, window_bounds = array<i64: 128, 128>}, {pipeline_mode = #tpu.pipeline_mode<synchronous>, transform_indices = @transform_4, window_bounds = array<i64: 8, 128>}, {transform_indices = @transform_5, window_bounds = array<i64: 2, 8, 128>}]} {
    %c0 = arith.constant 0 : index
    %c0_0 = arith.constant 0 : index
    %0 = vector.load %arg5[%c0, %c0_0] : memref<8x128xf32, #tpu.memory_space<vmem>>, vector<1x128xf32>
    %c1 = arith.constant 1 : index
    %c0_1 = arith.constant 0 : index
    %1 = vector.load %arg5[%c1, %c0_1] : memref<8x128xf32, #tpu.memory_space<vmem>>, vector<1x128xf32>
    %c2 = arith.constant 2 : index
    %c0_2 = arith.constant 0 : index
    %2 = vector.load %arg5[%c2, %c0_2] : memref<8x128xf32, #tpu.memory_space<vmem>>, vector<1x128xf32>
    %c3 = arith.constant 3 : index
    %c0_3 = arith.constant 0 : index
    %3 = vector.load %arg5[%c3, %c0_3] : memref<8x128xf32, #tpu.memory_space<vmem>>, vector<1x128xf32>
    %c0_4 = arith.constant 0 : index
    %c0_5 = arith.constant 0 : index
    %c0_6 = arith.constant 0 : index
    %4 = vector.load %arg1[%c0_4, %c0_5, %c0_6] : memref<2x8x384xbf16, #tpu.memory_space<vmem>>, vector<2x8x384xbf16>
    %5 = vector.shape_cast %4 : vector<2x8x384xbf16> to vector<16x384xbf16>
    %c0_7 = arith.constant 0 : index
    %c0_8 = arith.constant 0 : index
    %6 = vector.load %arg2[%c0_7, %c0_8] : memref<384x128xbf16, #tpu.memory_space<vmem>>, vector<384x128xbf16>
    %cst = arith.constant dense<0.000000e+00> : vector<16x128xf32>
    %7 = tpu.matmul %5, %6, %cst {dimension_numbers = #tpu.dot_dimension_numbers<[1], [0], [0], [1], [0, 0, 1, 1], [], []>} : vector<16x384xbf16>, vector<384x128xbf16>, vector<16x128xf32> -> vector<16x128xf32>
    %8 = vector.extract_strided_slice %5 {offsets = [0, 128], sizes = [16, 128], strides = [1, 1]} : vector<16x384xbf16> to vector<16x128xbf16>
    %9 = vector.broadcast %0 : vector<1x128xf32> to vector<16x128xf32>
    %10 = arith.mulf %7, %9 : vector<16x128xf32>
    %11 = vector.broadcast %1 : vector<1x128xf32> to vector<16x128xf32>
    %12 = arith.addf %10, %11 : vector<16x128xf32>
    %cst_9 = arith.constant 0.000000e+00 : f32
    %13 = vector.broadcast %cst_9 : f32 to vector<16x128xf32>
    %14 = arith.maximumf %12, %13 : vector<16x128xf32>
    %15 = arith.truncf %14 : vector<16x128xf32> to vector<16x128xbf16>
    %16 = vector.shape_cast %15 : vector<16x128xbf16> to vector<2x8x128xbf16>
    %c0_10 = arith.constant 0 : index
    %c1_11 = arith.constant 1 : index
    %c0_12 = arith.constant 0 : index
    %17 = vector.load %arg7[%c0_10, %c1_11, %c0_12] : memref<2x10x128xbf16, #tpu.memory_space<vmem>>, vector<2x8x128xbf16>
    tpu.vector_store %arg7[%c0_10, %c1_11, %c0_12], %16 {strides = array<i32>} : memref<2x10x128xbf16, #tpu.memory_space<vmem>>, vector<2x8x128xbf16>,
    %cst_13 = arith.constant 0.000000e+00 : bf16
    %18 = vector.broadcast %cst_13 : bf16 to vector<2x1x128xbf16>
    %c0_14 = arith.constant 0 : index
    %c0_15 = arith.constant 0 : index
    %c0_16 = arith.constant 0 : index
    %19 = vector.load %arg7[%c0_14, %c0_15, %c0_16] : memref<2x10x128xbf16, #tpu.memory_space<vmem>>, vector<2x1x128xbf16>
    tpu.vector_store %arg7[%c0_14, %c0_15, %c0_16], %18 {strides = array<i32>} : memref<2x10x128xbf16, #tpu.memory_space<vmem>>, vector<2x1x128xbf16>,
    %cst_17 = arith.constant 0.000000e+00 : bf16
    %20 = vector.broadcast %cst_17 : bf16 to vector<2x1x128xbf16>
    %c0_18 = arith.constant 0 : index
    %c9 = arith.constant 9 : index
    %c0_19 = arith.constant 0 : index
    %21 = vector.load %arg7[%c0_18, %c9, %c0_19] : memref<2x10x128xbf16, #tpu.memory_space<vmem>>, vector<2x1x128xbf16>
    tpu.vector_store %arg7[%c0_18, %c9, %c0_19], %20 {strides = array<i32>} : memref<2x10x128xbf16, #tpu.memory_space<vmem>>, vector<2x1x128xbf16>,
    %c128 = arith.constant 128 : index
    %c0_20 = arith.constant 0 : index
    %22 = vector.load %arg3[%c128, %c0_20] : memref<384x128xbf16, #tpu.memory_space<vmem>>, vector<128x128xbf16>
    %cst_21 = arith.constant dense<0.000000e+00> : vector<16x128xf32>
    %23 = tpu.matmul %15, %22, %cst_21 {dimension_numbers = #tpu.dot_dimension_numbers<[1], [0], [0], [1], [0, 0, 1, 1], [], []>} : vector<16x128xbf16>, vector<128x128xbf16>, vector<16x128xf32> -> vector<16x128xf32>
    %c0_22 = arith.constant 0 : index
    %c0_23 = arith.constant 0 : index
    %c0_24 = arith.constant 0 : index
    %24 = vector.load %arg7[%c0_22, %c0_23, %c0_24] : memref<2x10x128xbf16, #tpu.memory_space<vmem>>, vector<2x8x128xbf16>
    %25 = vector.shape_cast %24 : vector<2x8x128xbf16> to vector<16x128xbf16>
    %c0_25 = arith.constant 0 : index
    %c0_26 = arith.constant 0 : index
    %26 = vector.load %arg3[%c0_25, %c0_26] : memref<384x128xbf16, #tpu.memory_space<vmem>>, vector<128x128xbf16>
    %cst_27 = arith.constant dense<0.000000e+00> : vector<16x128xf32>
    %27 = tpu.matmul %25, %26, %cst_27 {dimension_numbers = #tpu.dot_dimension_numbers<[1], [0], [0], [1], [0, 0, 1, 1], [], []>} : vector<16x128xbf16>, vector<128x128xbf16>, vector<16x128xf32> -> vector<16x128xf32>
    %28 = arith.addf %23, %27 : vector<16x128xf32>
    %c0_28 = arith.constant 0 : index
    %c2_29 = arith.constant 2 : index
    %c0_30 = arith.constant 0 : index
    %29 = vector.load %arg7[%c0_28, %c2_29, %c0_30] : memref<2x10x128xbf16, #tpu.memory_space<vmem>>, vector<2x8x128xbf16>
    %30 = vector.shape_cast %29 : vector<2x8x128xbf16> to vector<16x128xbf16>
    %c256 = arith.constant 256 : index
    %c0_31 = arith.constant 0 : index
    %31 = vector.load %arg3[%c256, %c0_31] : memref<384x128xbf16, #tpu.memory_space<vmem>>, vector<128x128xbf16>
    %cst_32 = arith.constant dense<0.000000e+00> : vector<16x128xf32>
    %32 = tpu.matmul %30, %31, %cst_32 {dimension_numbers = #tpu.dot_dimension_numbers<[1], [0], [0], [1], [0, 0, 1, 1], [], []>} : vector<16x128xbf16>, vector<128x128xbf16>, vector<16x128xf32> -> vector<16x128xf32>
    %33 = arith.addf %28, %32 : vector<16x128xf32>
    %34 = vector.broadcast %2 : vector<1x128xf32> to vector<16x128xf32>
    %35 = arith.mulf %33, %34 : vector<16x128xf32>
    %36 = vector.broadcast %3 : vector<1x128xf32> to vector<16x128xf32>
    %37 = arith.addf %35, %36 : vector<16x128xf32>
    %c4 = arith.constant 4 : index
    %c0_33 = arith.constant 0 : index
    %38 = vector.load %arg5[%c4, %c0_33] : memref<8x128xf32, #tpu.memory_space<vmem>>, vector<1x128xf32>
    %c5 = arith.constant 5 : index
    %c0_34 = arith.constant 0 : index
    %39 = vector.load %arg5[%c5, %c0_34] : memref<8x128xf32, #tpu.memory_space<vmem>>, vector<1x128xf32>
    %c0_35 = arith.constant 0 : index
    %c0_36 = arith.constant 0 : index
    %40 = vector.load %arg4[%c0_35, %c0_36] : memref<128x128xbf16, #tpu.memory_space<vmem>>, vector<128x128xbf16>
    %cst_37 = arith.constant dense<0.000000e+00> : vector<16x128xf32>
    %41 = tpu.matmul %8, %40, %cst_37 {dimension_numbers = #tpu.dot_dimension_numbers<[1], [0], [0], [1], [0, 0, 1, 1], [], []>} : vector<16x128xbf16>, vector<128x128xbf16>, vector<16x128xf32> -> vector<16x128xf32>
    %42 = vector.broadcast %38 : vector<1x128xf32> to vector<16x128xf32>
    %43 = arith.mulf %41, %42 : vector<16x128xf32>
    %44 = vector.broadcast %39 : vector<1x128xf32> to vector<16x128xf32>
    %45 = arith.addf %43, %44 : vector<16x128xf32>
    %46 = arith.addf %37, %45 : vector<16x128xf32>
    %cst_38 = arith.constant 0.000000e+00 : f32
    %47 = vector.broadcast %cst_38 : f32 to vector<16x128xf32>
    %48 = arith.maximumf %46, %47 : vector<16x128xf32>
    %49 = arith.truncf %48 : vector<16x128xf32> to vector<16x128xbf16>
    %50 = vector.shape_cast %49 : vector<16x128xbf16> to vector<2x8x128xbf16>
    %c0_39 = arith.constant 0 : index
    %c0_40 = arith.constant 0 : index
    %c0_41 = arith.constant 0 : index
    %51 = vector.load %arg6[%c0_39, %c0_40, %c0_41] : memref<2x8x128xbf16, #tpu.memory_space<vmem>>, vector<2x8x128xbf16>
    tpu.vector_store %arg6[%c0_39, %c0_40, %c0_41], %50 {strides = array<i32>} : memref<2x8x128xbf16, #tpu.memory_space<vmem>>, vector<2x8x128xbf16>,
    return
  }
  func.func @transform_0(%arg0: i32) -> (i32, i32, i32) {
    %c0_i32 = arith.constant 0 : i32
    %c0_i32_0 = arith.constant 0 : i32
    %c0_i32_1 = arith.constant 0 : i32
    return %arg0, %c0_i32, %c0_i32_0 : i32, i32, i32
  }
  func.func @transform_1(%arg0: i32) -> (i32, i32) {
    %c0_i32 = arith.constant 0 : i32
    %c0_i32_0 = arith.constant 0 : i32
    %c0_i32_1 = arith.constant 0 : i32
    return %c0_i32, %c0_i32_0 : i32, i32
  }
  func.func @transform_2(%arg0: i32) -> (i32, i32) {
    %c0_i32 = arith.constant 0 : i32
    %c0_i32_0 = arith.constant 0 : i32
    %c0_i32_1 = arith.constant 0 : i32
    return %c0_i32, %c0_i32_0 : i32, i32
  }
  func.func @transform_3(%arg0: i32) -> (i32, i32) {
    %c0_i32 = arith.constant 0 : i32
    %c0_i32_0 = arith.constant 0 : i32
    %c0_i32_1 = arith.constant 0 : i32
    return %c0_i32, %c0_i32_0 : i32, i32
  }
  func.func @transform_4(%arg0: i32) -> (i32, i32) {
    %c0_i32 = arith.constant 0 : i32
    %c0_i32_0 = arith.constant 0 : i32
    %c0_i32_1 = arith.constant 0 : i32
    return %c0_i32, %c0_i32_0 : i32, i32
  }
  func.func @transform_5(%arg0: i32) -> (i32, i32, i32) {
    %c0_i32 = arith.constant 0 : i32
    %c0_i32_0 = arith.constant 0 : i32
    %c0_i32_1 = arith.constant 0 : i32
    return %arg0, %c0_i32, %c0_i32_0 : i32, i32, i32
  }
}

</mosaic_0001>

<llo_original>
// kernel: tpu_custom_call.1
$region0: #{tpu_custom_call.1}
  #allocation0 [shape = 'u32[]', space=smem, size = 0x4, offset = 0x4, fixed_abs, tag = 'smem constant byte address 0x4 - core index']
  #allocation1 [shape = 'u32[72,128]{1,0:T(1,128)}', space=vmem, size = 0x9000, scoped, tag = 'internal scratch']
  #allocation2 [shape = 'bf16[2,10,128]{2,1,0:T(8,128)(2,1)}', space=vmem, size = 0x2000, scoped, tag = 'scratch operand']
  %s0 = inlined_call_operand.hbm [shape: bf16[2,8,384], index: 0, kind: input, shape index: {}]
  %s1 = inlined_call_operand.hbm [shape: bf16[384,128], index: 1, kind: input, shape index: {}]
  %s2 = inlined_call_operand.hbm [shape: bf16[384,128], index: 2, kind: input, shape index: {}]
  %s3 = inlined_call_operand.hbm [shape: bf16[128,128], index: 3, kind: input, shape index: {}]
  %s4 = inlined_call_operand.hbm [shape: f32[8,128], index: 4, kind: input, shape index: {}]
  %s5 = inlined_call_operand.hbm [shape: bf16[2,8,128], index: 5, kind: output, shape index: {}]
  %s6 = sld [smem:[#allocation0]]
  $region50: #{tpu_custom_call.1} parent=0
    _
  %s8 = ssub.s32 1, %s6
  %s9 = scalar_select 0, %s8, %s6
  $region1: #{tpu_custom_call.1} parent=0
    #allocation3 [shape = 'u8[12288]{0}', space=vmem, size = 0x3000, scoped, tag = 'input window, operand 0, single buffered']
    #allocation4 [shape = 's32[1]{0}', space=sflag, size = 0x4, scoped, tag = 'scoped memory for tpu_custom_call.1']
    #allocation5 [shape = 's32[1]{0}', space=sflag, size = 0x4, scoped, tag = 'scoped memory for tpu_custom_call.1']
    #allocation6 [shape = 'u8[98304]{0}', space=vmem, size = 0x18000, scoped, tag = 'input window, operand 1, single buffered']
    #allocation7 [shape = 's32[1]{0}', space=sflag, size = 0x4, scoped, tag = 'scoped memory for tpu_custom_call.1']
    #allocation8 [shape = 'u8[98304]{0}', space=vmem, size = 0x18000, scoped, tag = 'input window, operand 2, single buffered']
    #allocation9 [shape = 'u8[32768]{0}', space=vmem, size = 0x8000, scoped, tag = 'input window, operand 3, single buffered']
    #allocation10 [shape = 's32[1]{0}', space=sflag, size = 0x4, scoped, tag = 'scoped memory for tpu_custom_call.1']
    #allocation11 [shape = 'u8[4096]{0}', space=vmem, size = 0x1000, scoped, tag = 'input window, operand 4, single buffered']
    #allocation12 [shape = 'u8[4096]{0}', space=vmem, size = 0x1000, scoped, tag = 'output window, operand 0, single buffered']
    %10 = vsyncpa [#allocation4], 0
    %11 = vsyncpa [#allocation7], 0
    %12 = vsyncpa [#allocation10], 0
    %13 = vsyncpa [#allocation5], 0
    // Predicated region
    $region2: #{tpu_custom_call.1} parent=1 // pred_check
      _
    $region3: #{tpu_custom_call.1} parent=1 // pred_check_branch
      %15 = sbr.rel (0) target = $region5
    $region4: #{tpu_custom_call.1} parent=1 // pred_region
      %17 = vsyncadd [#allocation4], 0
      %s18 = sshll.u32 %s0, 4
      %s19 = int_to_ptr.hbm [resolvable:$true] %s18
      %s20 = sshll.u32 [#allocation3], 4
      %s21 = int_to_ptr.vmem [resolvable:$true] %s20
      %26 = dma.hbm_to_vmem [thread:$0]  %s19, 384, %s21, [#allocation4], 192, 192, 12
    $region5: #{tpu_custom_call.1} parent=1 // pred_fallthru
      _
    // Predicated region
    $region6: #{tpu_custom_call.1} parent=1 // pred_check
      _
    $region7: #{tpu_custom_call.1} parent=1 // pred_check_branch
      %28 = sbr.rel (0) target = $region9
    $region8: #{tpu_custom_call.1} parent=1 // pred_region
      %30 = vsyncadd [#allocation7], 0
      %s31 = sshll.u32 %s1, 4
      %s32 = int_to_ptr.hbm [resolvable:$true] %s31
      %s33 = sshll.u32 [#allocation6], 4
      %s34 = int_to_ptr.vmem [resolvable:$true] %s33
      %39 = dma.hbm_to_vmem [thread:$0]  %s32, 3072, %s34, [#allocation7], 64, 64, 4
    $region9: #{tpu_custom_call.1} parent=1 // pred_fallthru
      _
    // Predicated region
    $region10: #{tpu_custom_call.1} parent=1 // pred_check
      _
    $region11: #{tpu_custom_call.1} parent=1 // pred_check_branch
      %41 = sbr.rel (0) target = $region13
    $region12: #{tpu_custom_call.1} parent=1 // pred_region
      %43 = vsyncadd [#allocation7], 0
      %s44 = sshll.u32 %s2, 4
      %s45 = int_to_ptr.hbm [resolvable:$true] %s44
      %s46 = sshll.u32 [#allocation8], 4
      %s47 = int_to_ptr.vmem [resolvable:$true] %s46
      %52 = dma.hbm_to_vmem [thread:$0]  %s45, 3072, %s47, [#allocation7], 64, 64, 4
    $region13: #{tpu_custom_call.1} parent=1 // pred_fallthru
      _
    // Predicated region
    $region14: #{tpu_custom_call.1} parent=1 // pred_check
      _
    $region15: #{tpu_custom_call.1} parent=1 // pred_check_branch
      %54 = sbr.rel (0) target = $region17
    $region16: #{tpu_custom_call.1} parent=1 // pred_region
      %56 = vsyncadd [#allocation10], 0
      %s57 = sshll.u32 %s3, 4
      %s58 = int_to_ptr.hbm [resolvable:$true] %s57
      %s59 = sshll.u32 [#allocation9], 4
      %s60 = int_to_ptr.vmem [resolvable:$true] %s59
      %65 = dma.hbm_to_vmem [thread:$0]  %s58, 1024, %s60, [#allocation10], 64, 64, 4
    $region17: #{tpu_custom_call.1} parent=1 // pred_fallthru
      _
    // Predicated region
    $region18: #{tpu_custom_call.1} parent=1 // pred_check
      _
    $region19: #{tpu_custom_call.1} parent=1 // pred_check_branch
      %67 = sbr.rel (0) target = $region21
    $region20: #{tpu_custom_call.1} parent=1 // pred_region
      %69 = vsyncadd [#allocation10], 0
      %s71 = sshll.u32 %s4, 4
      %s72 = int_to_ptr.hbm [resolvable:$true] %s71
      %s73 = sshll.u32 [#allocation11], 4
      %s74 = int_to_ptr.vmem [resolvable:$true] %s73
      %76 = dma.hbm_to_vmem [thread:$0]  %s72, 128, %s74, [#allocation10]
    $region21: #{tpu_custom_call.1} parent=1 // pred_fallthru
      _
    // Predicated region
    $region22: #{tpu_custom_call.1} parent=1 // pred_check
      _
    $region23: #{tpu_custom_call.1} parent=1 // pred_check_branch
      %78 = sbr.rel (0) target = $region25
    $region24: #{tpu_custom_call.1} parent=1 // pred_region
      %80 = dma.done [#allocation4], 384
    $region25: #{tpu_custom_call.1} parent=1 // pred_fallthru
      _
    // Predicated region
    $region26: #{tpu_custom_call.1} parent=1 // pred_check
      _
    $region27: #{tpu_custom_call.1} parent=1 // pred_check_branch
      %82 = sbr.rel (0) target = $region29
    $region28: #{tpu_custom_call.1} parent=1 // pred_region
      %84 = dma.done [#allocation7], 3072
    $region29: #{tpu_custom_call.1} parent=1 // pred_fallthru
      _
    // Predicated region
    $region30: #{tpu_custom_call.1} parent=1 // pred_check
      _
    $region31: #{tpu_custom_call.1} parent=1 // pred_check_branch
      %86 = sbr.rel (0) target = $region33
    $region32: #{tpu_custom_call.1} parent=1 // pred_region
      %88 = dma.done [#allocation7], 3072
    $region33: #{tpu_custom_call.1} parent=1 // pred_fallthru
      _
    // Predicated region
    $region34: #{tpu_custom_call.1} parent=1 // pred_check
      _
    $region35: #{tpu_custom_call.1} parent=1 // pred_check_branch
      %90 = sbr.rel (0) target = $region37
    $region36: #{tpu_custom_call.1} parent=1 // pred_region
      %92 = dma.done [#allocation10], 1024
    $region37: #{tpu_custom_call.1} parent=1 // pred_fallthru
      _
    // Predicated region
    $region38: #{tpu_custom_call.1} parent=1 // pred_check
      _
    $region39: #{tpu_custom_call.1} parent=1 // pred_check_branch
      %94 = sbr.rel (0) target = $region41
    $region40: #{tpu_custom_call.1} parent=1 // pred_region
      %96 = dma.done [#allocation10], 128
    $region41: #{tpu_custom_call.1} parent=1 // pred_fallthru
      _
    %v98 = vld [vmem:[#allocation11] sm:$0x1]
    %v99 = vld [vmem:[#allocation11 + $0x1] sm:$0x1]
    %v100 = vld [vmem:[#allocation11 + $0x2] sm:$0x1]
    %v101 = vld [vmem:[#allocation11 + $0x3] sm:$0x1]
    %v102 = vld [vmem:[#allocation3] sm:$0xff]
    %v103 = vld [vmem:[#allocation3 + $0x8] sm:$0xf]
    %v104 = vld [vmem:[#allocation3 + $0xc] sm:$0xff]
    %v105 = vld [vmem:[#allocation3 + $0x14] sm:$0xf]
    %v106 = vld [vmem:[#allocation6] sm:$0xf]
    %v107 = vld [vmem:[#allocation6 + $0x4] sm:$0xf]
    %v108 = vld [vmem:[#allocation6 + $0x8] sm:$0xf]
    %v109 = vld [vmem:[#allocation6 + $0xc] sm:$0xf]
    %v110 = vld [vmem:[#allocation6 + $0x10] sm:$0xf]
    %v111 = vld [vmem:[#allocation6 + $0x14] sm:$0xf]
    %v112 = vld [vmem:[#allocation6 + $0x18] sm:$0xf]
    %v113 = vld [vmem:[#allocation6 + $0x1c] sm:$0xf]
    %v114 = vld [vmem:[#allocation6 + $0x20] sm:$0xf]
    %v115 = vld [vmem:[#allocation6 + $0x24] sm:$0xf]
    %v116 = vld [vmem:[#allocation6 + $0x28] sm:$0xf]
    %v117 = vld [vmem:[#allocation6 + $0x2c] sm:$0xf]
    %v118 = vld [vmem:[#allocation6 + $0x30] sm:$0xf]
    %v119 = vld [vmem:[#allocation6 + $0x34] sm:$0xf]
    %v120 = vld [vmem:[#allocation6 + $0x38] sm:$0xf]
    %v121 = vld [vmem:[#allocation6 + $0x3c] sm:$0xf]
    %v122 = vld [vmem:[#allocation6 + $0x40] sm:$0xf]
    %v123 = vld [vmem:[#allocation6 + $0x44] sm:$0xf]
    %v124 = vld [vmem:[#allocation6 + $0x48] sm:$0xf]
    %v125 = vld [vmem:[#allocation6 + $0x4c] sm:$0xf]
    %v126 = vld [vmem:[#allocation6 + $0x50] sm:$0xf]
    %v127 = vld [vmem:[#allocation6 + $0x54] sm:$0xf]
    %v128 = vld [vmem:[#allocation6 + $0x58] sm:$0xf]
    %v129 = vld [vmem:[#allocation6 + $0x5c] sm:$0xf]
    %v130 = vld [vmem:[#allocation6 + $0x60] sm:$0xf]
    %v131 = vld [vmem:[#allocation6 + $0x64] sm:$0xf]
    %v132 = vld [vmem:[#allocation6 + $0x68] sm:$0xf]
    %v133 = vld [vmem:[#allocation6 + $0x6c] sm:$0xf]
    %v134 = vld [vmem:[#allocation6 + $0x70] sm:$0xf]
    %v135 = vld [vmem:[#allocation6 + $0x74] sm:$0xf]
    %v136 = vld [vmem:[#allocation6 + $0x78] sm:$0xf]
    %v137 = vld [vmem:[#allocation6 + $0x7c] sm:$0xf]
    %v138 = vld [vmem:[#allocation6 + $0x80] sm:$0xf]
    %v139 = vld [vmem:[#allocation6 + $0x84] sm:$0xf]
    %v140 = vld [vmem:[#allocation6 + $0x88] sm:$0xf]
    %v141 = vld [vmem:[#allocation6 + $0x8c] sm:$0xf]
    %v142 = vld [vmem:[#allocation6 + $0x90] sm:$0xf]
    %v143 = vld [vmem:[#allocation6 + $0x94] sm:$0xf]
    %v144 = vld [vmem:[#allocation6 + $0x98] sm:$0xf]
    %v145 = vld [vmem:[#allocation6 + $0x9c] sm:$0xf]
    %v146 = vld [vmem:[#allocation6 + $0xa0] sm:$0xf]
    %v147 = vld [vmem:[#allocation6 + $0xa4] sm:$0xf]
    %v148 = vld [vmem:[#allocation6 + $0xa8] sm:$0xf]
    %v149 = vld [vmem:[#allocation6 + $0xac] sm:$0xf]
    %v150 = vld [vmem:[#allocation6 + $0xb0] sm:$0xf]
    %v151 = vld [vmem:[#allocation6 + $0xb4] sm:$0xf]
    %v152 = vld [vmem:[#allocation6 + $0xb8] sm:$0xf]
    %v153 = vld [vmem:[#allocation6 + $0xbc] sm:$0xf]
    %v158 = vunpack.c.l.b16 %v102
    %v159 = vunpack.c.h.b16 %v102
    %v160 = vunpack.c.l.b16 %v103
    %v161 = vunpack.c.l.b16 %v104
    %v162 = vunpack.c.h.b16 %v104
    %v163 = vunpack.c.l.b16 %v105
    %v164 = vpack.c.b16 %v161, %v158
    %v165 = vpack.c.b16 %v162, %v159
    %v166 = vpack.c.b16 %v163, %v160
    %v218 = vunpack.c.l.b16 %v106
    %v219 = vunpack.c.l.b16 %v107
    %v220 = vunpack.c.l.b16 %v108
    %v221 = vunpack.c.l.b16 %v109
    %v222 = vunpack.c.l.b16 %v110
    %v223 = vunpack.c.l.b16 %v111
    %v224 = vunpack.c.l.b16 %v112
    %v225 = vunpack.c.l.b16 %v113
    %v226 = vunpack.c.l.b16 %v114
    %v227 = vunpack.c.l.b16 %v115
    %v228 = vunpack.c.l.b16 %v116
    %v229 = vunpack.c.l.b16 %v117
    %v230 = vunpack.c.l.b16 %v118
    %v231 = vunpack.c.l.b16 %v119
    %v232 = vunpack.c.l.b16 %v120
    %v233 = vunpack.c.l.b16 %v121
    %v234 = vunpack.c.l.b16 %v122
    %v235 = vunpack.c.l.b16 %v123
    %v236 = vunpack.c.l.b16 %v124
    %v237 = vunpack.c.l.b16 %v125
    %v238 = vunpack.c.l.b16 %v126
    %v239 = vunpack.c.l.b16 %v127
    %v240 = vunpack.c.l.b16 %v128
    %v241 = vunpack.c.l.b16 %v129
    %v242 = vunpack.c.l.b16 %v130
    %v243 = vunpack.c.l.b16 %v131
    %v244 = vunpack.c.l.b16 %v132
    %v245 = vunpack.c.l.b16 %v133
    %v246 = vunpack.c.l.b16 %v134
    %v247 = vunpack.c.l.b16 %v135
    %v248 = vunpack.c.l.b16 %v136
    %v249 = vunpack.c.l.b16 %v137
    %v250 = vunpack.c.l.b16 %v138
    %v251 = vunpack.c.l.b16 %v139
    %v252 = vunpack.c.l.b16 %v140
    %v253 = vunpack.c.l.b16 %v141
    %v254 = vunpack.c.l.b16 %v142
    %v255 = vunpack.c.l.b16 %v143
    %v256 = vunpack.c.l.b16 %v144
    %v257 = vunpack.c.l.b16 %v145
    %v258 = vunpack.c.l.b16 %v146
    %v259 = vunpack.c.l.b16 %v147
    %v260 = vunpack.c.l.b16 %v148
    %v261 = vunpack.c.l.b16 %v149
    %v262 = vunpack.c.l.b16 %v150
    %v263 = vunpack.c.l.b16 %v151
    %v264 = vunpack.c.l.b16 %v152
    %v265 = vunpack.c.l.b16 %v153
    %v266 = vpack.c.b16 %v219, %v218
    %v267 = vpack.c.b16 %v221, %v220
    %v268 = vpack.c.b16 %v223, %v222
    %v269 = vpack.c.b16 %v225, %v224
    %v270 = vpack.c.b16 %v227, %v226
    %v271 = vpack.c.b16 %v229, %v228
    %v272 = vpack.c.b16 %v231, %v230
    %v273 = vpack.c.b16 %v233, %v232
    %v274 = vpack.c.b16 %v235, %v234
    %v275 = vpack.c.b16 %v237, %v236
    %v276 = vpack.c.b16 %v239, %v238
    %v277 = vpack.c.b16 %v241, %v240
    %v278 = vpack.c.b16 %v243, %v242
    %v279 = vpack.c.b16 %v245, %v244
    %v280 = vpack.c.b16 %v247, %v246
    %v281 = vpack.c.b16 %v249, %v248
    %v282 = vpack.c.b16 %v251, %v250
    %v283 = vpack.c.b16 %v253, %v252
    %v284 = vpack.c.b16 %v255, %v254
    %v285 = vpack.c.b16 %v257, %v256
    %v286 = vpack.c.b16 %v259, %v258
    %v287 = vpack.c.b16 %v261, %v260
    %v288 = vpack.c.b16 %v263, %v262
    %v289 = vpack.c.b16 %v265, %v264
    %314 = vmatpush.bf16.msra.mxu0 %v273
    %315 = vmatpush.bf16.msra.mxu0 %v272
    %316 = vmatpush.bf16.msra.mxu0 %v271
    %317 = vmatpush.bf16.msra.mxu0 %v270
    %318 = vmatpush.bf16.msra.mxu0 %v269
    %319 = vmatpush.bf16.msra.mxu0 %v268
    %320 = vmatpush.bf16.msra.mxu0 %v267
    %321 = vmatpush.bf16.msra.mxu0 %v266
    %322 = vmatmul.bf16.gmra.mxu0 %v164
    %v323 = vpop.f32.mrf.mxu0
    %v324 = vadd.f32 0.0, %v323
    %v325 = vpop.f32.mrf.mxu0
    %v326 = vadd.f32 0.0, %v325
    %327 = vdwg.mxu0
    %328 = vmatpush.bf16.msra.mxu0 %v281
    %329 = vmatpush.bf16.msra.mxu0 %v280
    %330 = vmatpush.bf16.msra.mxu0 %v279
    %331 = vmatpush.bf16.msra.mxu0 %v278
    %332 = vmatpush.bf16.msra.mxu0 %v277
    %333 = vmatpush.bf16.msra.mxu0 %v276
    %334 = vmatpush.bf16.msra.mxu0 %v275
    %335 = vmatpush.bf16.msra.mxu0 %v274
    %336 = vmatmul.bf16.gmra.mxu0 %v165
    %v337 = vpop.f32.mrf.mxu0
    %v338 = vadd.f32 %v324, %v337
    %v339 = vpop.f32.mrf.mxu0
    %v340 = vadd.f32 %v326, %v339
    %341 = vdwg.mxu0
    %342 = vmatpush.bf16.msra.mxu0 %v289
    %343 = vmatpush.bf16.msra.mxu0 %v288
    %344 = vmatpush.bf16.msra.mxu0 %v287
    %345 = vmatpush.bf16.msra.mxu0 %v286
    %346 = vmatpush.bf16.msra.mxu0 %v285
    %347 = vmatpush.bf16.msra.mxu0 %v284
    %348 = vmatpush.bf16.msra.mxu0 %v283
    %349 = vmatpush.bf16.msra.mxu0 %v282
    %350 = vmatmul.bf16.gmra.mxu0 %v166
    %v351 = vpop.f32.mrf.mxu0
    %v352 = vadd.f32 %v338, %v351
    %v353 = vpop.f32.mrf.mxu0
    %v354 = vadd.f32 %v340, %v353
    %355 = vdwg.mxu0
    %v356 = vperm.slane %v98, 0
    %v357 = vmul.f32 %v352, %v356
    %v358 = vmul.f32 %v354, %v356
    %v359 = vperm.slane %v99, 0
    %v360 = vadd.f32 %v357, %v359
    %v361 = vadd.f32 %v358, %v359
    %v362 = vmax.f32 %v360, 0.0
    %v363 = vmax.f32 %v361, 0.0
    %v364 = vpack.c.bf16 %v362, %v362
    %v365 = vpack.c.bf16 %v363, %v363
    %v367 = vshrl.u32 %v364, 16
    %v369 = vrot.slane %v367, 7
    %v370 = vshll.u32 %v364, 16
    %v372 = vor.u32 %v369, %v370
    %v373 = vrot.slane %v369, 4
    %v375 = vshrl.u32 %v365, 16
    %v377 = vrot.slane %v375, 7
    %v378 = vshll.u32 %v365, 16
    %v380 = vor.u32 %v377, %v378
    %v381 = vrot.slane %v377, 4
    %vm386 = vcmask 1043456
    %vm387 = vsmask.f32 7938
    %vm388 = vmand %vm386, %vm387
    %v389 = vld [vmem:[#allocation2] sm:$0xf]
    %v390 = vsel %vm388, %v372, %v389
    %391 = vst [vmem:[#allocation2] sm:$0xf] %v390
    %vm392 = vcmask 1040384
    %vm393 = vsmask.f32 256
    %vm394 = vmand %vm392, %vm393
    %v395 = vld [vmem:[#allocation2 + $0x4] sm:$0x1]
    %v396 = vsel %vm394, %v373, %v395
    %397 = vst [vmem:[#allocation2 + $0x4] sm:$0x1] %v396
    %v398 = vld [vmem:[#allocation2 + $0x8] sm:$0xf]
    %v399 = vsel %vm388, %v380, %v398
    %400 = vst [vmem:[#allocation2 + $0x8] sm:$0xf] %v399
    %v401 = vld [vmem:[#allocation2 + $0xc] sm:$0x1]
    %v402 = vsel %vm394, %v381, %v401
    %403 = vst [vmem:[#allocation2 + $0xc] sm:$0x1] %v402
    %v404 = vld [vmem:[#allocation2] sm:$0x1]
    %v405 = vsel %vm394, 0, %v404
    %406 = vst [vmem:[#allocation2] sm:$0x1] %v405
    %v407 = vld [vmem:[#allocation2 + $0x8] sm:$0x1]
    %v408 = vsel %vm394, 0, %v407
    %409 = vst [vmem:[#allocation2 + $0x8] sm:$0x1] %v408
    %vm410 = vmand %vm392, %vm387
    %v411 = vld [vmem:[#allocation2 + $0x4] sm:$0x1]
    %v412 = vsel %vm410, 0, %v411
    %413 = vst [vmem:[#allocation2 + $0x4] sm:$0x1] %v412
    %v414 = vld [vmem:[#allocation2 + $0xc] sm:$0x1]
    %v415 = vsel %vm410, 0, %v414
    %416 = vst [vmem:[#allocation2 + $0xc] sm:$0x1] %v415
    %v417 = vld [vmem:[#allocation8 + $0x40] sm:$0xf]
    %v418 = vld [vmem:[#allocation8 + $0x44] sm:$0xf]
    %v419 = vld [vmem:[#allocation8 + $0x48] sm:$0xf]
    %v420 = vld [vmem:[#allocation8 + $0x4c] sm:$0xf]
    %v421 = vld [vmem:[#allocation8 + $0x50] sm:$0xf]
    %v422 = vld [vmem:[#allocation8 + $0x54] sm:$0xf]
    %v423 = vld [vmem:[#allocation8 + $0x58] sm:$0xf]
    %v424 = vld [vmem:[#allocation8 + $0x5c] sm:$0xf]
    %v425 = vld [vmem:[#allocation8 + $0x60] sm:$0xf]
    %v426 = vld [vmem:[#allocation8 + $0x64] sm:$0xf]
    %v427 = vld [vmem:[#allocation8 + $0x68] sm:$0xf]
    %v428 = vld [vmem:[#allocation8 + $0x6c] sm:$0xf]
    %v429 = vld [vmem:[#allocation8 + $0x70] sm:$0xf]
    %v430 = vld [vmem:[#allocation8 + $0x74] sm:$0xf]
    %v431 = vld [vmem:[#allocation8 + $0x78] sm:$0xf]
    %v432 = vld [vmem:[#allocation8 + $0x7c] sm:$0xf]
    %v433 = vld [vmem:[#allocation2] sm:$0xf]
    %v434 = vld [vmem:[#allocation2 + $0x8] sm:$0xf]
    %v435 = vld [vmem:[#allocation8] sm:$0xf]
    %v436 = vld [vmem:[#allocation8 + $0x4] sm:$0xf]
    %v437 = vld [vmem:[#allocation8 + $0x8] sm:$0xf]
    %v438 = vld [vmem:[#allocation8 + $0xc] sm:$0xf]
    %v439 = vld [vmem:[#allocation8 + $0x10] sm:$0xf]
    %v440 = vld [vmem:[#allocation8 + $0x14] sm:$0xf]
    %v441 = vld [vmem:[#allocation8 + $0x18] sm:$0xf]
    %v442 = vld [vmem:[#allocation8 + $0x1c] sm:$0xf]
    %v443 = vld [vmem:[#allocation8 + $0x20] sm:$0xf]
    %v444 = vld [vmem:[#allocation8 + $0x24] sm:$0xf]
    %v445 = vld [vmem:[#allocation8 + $0x28] sm:$0xf]
    %v446 = vld [vmem:[#allocation8 + $0x2c] sm:$0xf]
    %v447 = vld [vmem:[#allocation8 + $0x30] sm:$0xf]
    %v448 = vld [vmem:[#allocation8 + $0x34] sm:$0xf]
    %v449 = vld [vmem:[#allocation8 + $0x38] sm:$0xf]
    %v450 = vld [vmem:[#allocation8 + $0x3c] sm:$0xf]
    %v453 = vunpack.c.l.b16 %v433
    %v454 = vunpack.c.l.b16 %v434
    %v455 = vpack.c.b16 %v454, %v453
    %v473 = vunpack.c.l.b16 %v435
    %v474 = vunpack.c.l.b16 %v436
    %v475 = vunpack.c.l.b16 %v437
    %v476 = vunpack.c.l.b16 %v438
    %v477 = vunpack.c.l.b16 %v439
    %v478 = vunpack.c.l.b16 %v440
    %v479 = vunpack.c.l.b16 %v441
    %v480 = vunpack.c.l.b16 %v442
    %v481 = vunpack.c.l.b16 %v443
    %v482 = vunpack.c.l.b16 %v444
    %v483 = vunpack.c.l.b16 %v445
    %v484 = vunpack.c.l.b16 %v446
    %v485 = vunpack.c.l.b16 %v447
    %v486 = vunpack.c.l.b16 %v448
    %v487 = vunpack.c.l.b16 %v449
    %v488 = vunpack.c.l.b16 %v450
    %v489 = vpack.c.b16 %v474, %v473
    %v490 = vpack.c.b16 %v476, %v475
    %v491 = vpack.c.b16 %v478, %v477
    %v492 = vpack.c.b16 %v480, %v479
    %v493 = vpack.c.b16 %v482, %v481
    %v494 = vpack.c.b16 %v484, %v483
    %v495 = vpack.c.b16 %v486, %v485
    %v496 = vpack.c.b16 %v488, %v487
    %505 = vmatpush.bf16.msra.mxu0 %v496
    %506 = vmatpush.bf16.msra.mxu0 %v495
    %507 = vmatpush.bf16.msra.mxu0 %v494
    %508 = vmatpush.bf16.msra.mxu0 %v493
    %509 = vmatpush.bf16.msra.mxu0 %v492
    %510 = vmatpush.bf16.msra.mxu0 %v491
    %511 = vmatpush.bf16.msra.mxu0 %v490
    %512 = vmatpush.bf16.msra.mxu0 %v489
    %513 = vmatmul.bf16.gmra.mxu0 %v455
    %v514 = vpop.f32.mrf.mxu0
    %v515 = vadd.f32 0.0, %v514
    %v516 = vpop.f32.mrf.mxu0
    %v517 = vadd.f32 0.0, %v516
    %518 = vdwg.mxu0
    %v521 = vunpack.c.l.b16 %v364
    %v522 = vunpack.c.l.b16 %v365
    %v523 = vpack.c.b16 %v522, %v521
    %v541 = vunpack.c.l.b16 %v417
    %v542 = vunpack.c.l.b16 %v418
    %v543 = vunpack.c.l.b16 %v419
    %v544 = vunpack.c.l.b16 %v420
    %v545 = vunpack.c.l.b16 %v421
    %v546 = vunpack.c.l.b16 %v422
    %v547 = vunpack.c.l.b16 %v423
    %v548 = vunpack.c.l.b16 %v424
    %v549 = vunpack.c.l.b16 %v425
    %v550 = vunpack.c.l.b16 %v426
    %v551 = vunpack.c.l.b16 %v427
    %v552 = vunpack.c.l.b16 %v428
    %v553 = vunpack.c.l.b16 %v429
    %v554 = vunpack.c.l.b16 %v430
    %v555 = vunpack.c.l.b16 %v431
    %v556 = vunpack.c.l.b16 %v432
    %v557 = vpack.c.b16 %v542, %v541
    %v558 = vpack.c.b16 %v544, %v543
    %v559 = vpack.c.b16 %v546, %v545
    %v560 = vpack.c.b16 %v548, %v547
    %v561 = vpack.c.b16 %v550, %v549
    %v562 = vpack.c.b16 %v552, %v551
    %v563 = vpack.c.b16 %v554, %v553
    %v564 = vpack.c.b16 %v556, %v555
    %573 = vmatpush.bf16.msra.mxu0 %v564
    %574 = vmatpush.bf16.msra.mxu0 %v563
    %575 = vmatpush.bf16.msra.mxu0 %v562
    %576 = vmatpush.bf16.msra.mxu0 %v561
    %577 = vmatpush.bf16.msra.mxu0 %v560
    %578 = vmatpush.bf16.msra.mxu0 %v559
    %579 = vmatpush.bf16.msra.mxu0 %v558
    %580 = vmatpush.bf16.msra.mxu0 %v557
    %581 = vmatmul.bf16.gmra.mxu0 %v523
    %v582 = vpop.f32.mrf.mxu0
    %v583 = vadd.f32 %v515, %v582
    %v584 = vpop.f32.mrf.mxu0
    %v585 = vadd.f32 %v517, %v584
    %586 = vdwg.mxu0
    %v587 = vld [vmem:[#allocation2] sm:$0xe]
    %v588 = vld [vmem:[#allocation2 + $0x4] sm:$0x1]
    %v589 = vld [vmem:[#allocation2 + $0x8] sm:$0xe]
    %v590 = vld [vmem:[#allocation2 + $0xc] sm:$0x1]
    %vm595 = vcmask 1042432
    %vm596 = vcmask 1046532
    %vm597 = vmor %vm595, %vm596
    %v598 = vrot.slane %v587, 5
    %v599 = vrot.slane %v598, 4
    %v600 = vrot.slane %v588, 5
    %v601 = vsel %vm597, %v599, %v600
    %v602 = vrot.slane %v589, 5
    %v603 = vrot.slane %v602, 4
    %v604 = vrot.slane %v590, 5
    %v605 = vsel %vm597, %v603, %v604
    %v606 = vld [vmem:[#allocation8 + $0x80] sm:$0xf]
    %v607 = vld [vmem:[#allocation8 + $0x84] sm:$0xf]
    %v608 = vld [vmem:[#allocation8 + $0x88] sm:$0xf]
    %v609 = vld [vmem:[#allocation8 + $0x8c] sm:$0xf]
    %v610 = vld [vmem:[#allocation8 + $0x90] sm:$0xf]
    %v611 = vld [vmem:[#allocation8 + $0x94] sm:$0xf]
    %v612 = vld [vmem:[#allocation8 + $0x98] sm:$0xf]
    %v613 = vld [vmem:[#allocation8 + $0x9c] sm:$0xf]
    %v614 = vld [vmem:[#allocation8 + $0xa0] sm:$0xf]
    %v615 = vld [vmem:[#allocation8 + $0xa4] sm:$0xf]
    %v616 = vld [vmem:[#allocation8 + $0xa8] sm:$0xf]
    %v617 = vld [vmem:[#allocation8 + $0xac] sm:$0xf]
    %v618 = vld [vmem:[#allocation8 + $0xb0] sm:$0xf]
    %v619 = vld [vmem:[#allocation8 + $0xb4] sm:$0xf]
    %v620 = vld [vmem:[#allocation8 + $0xb8] sm:$0xf]
    %v621 = vld [vmem:[#allocation8 + $0xbc] sm:$0xf]
    %v622 = vunpack.c.l.b16 %v601
    %v623 = vunpack.c.l.b16 %v605
    %v624 = vpack.c.b16 %v623, %v622
    %v642 = vunpack.c.l.b16 %v606
    %v643 = vunpack.c.l.b16 %v607
    %v644 = vunpack.c.l.b16 %v608
    %v645 = vunpack.c.l.b16 %v609
    %v646 = vunpack.c.l.b16 %v610
    %v647 = vunpack.c.l.b16 %v611
    %v648 = vunpack.c.l.b16 %v612
    %v649 = vunpack.c.l.b16 %v613
    %v650 = vunpack.c.l.b16 %v614
    %v651 = vunpack.c.l.b16 %v615
    %v652 = vunpack.c.l.b16 %v616
    %v653 = vunpack.c.l.b16 %v617
    %v654 = vunpack.c.l.b16 %v618
    %v655 = vunpack.c.l.b16 %v619
    %v656 = vunpack.c.l.b16 %v620
    %v657 = vunpack.c.l.b16 %v621
    %v658 = vpack.c.b16 %v643, %v642
    %v659 = vpack.c.b16 %v645, %v644
    %v660 = vpack.c.b16 %v647, %v646
    %v661 = vpack.c.b16 %v649, %v648
    %v662 = vpack.c.b16 %v651, %v650
    %v663 = vpack.c.b16 %v653, %v652
    %v664 = vpack.c.b16 %v655, %v654
    %v665 = vpack.c.b16 %v657, %v656
    %674 = vmatpush.bf16.msra.mxu0 %v665
    %675 = vmatpush.bf16.msra.mxu0 %v664
    %676 = vmatpush.bf16.msra.mxu0 %v663
    %677 = vmatpush.bf16.msra.mxu0 %v662
    %678 = vmatpush.bf16.msra.mxu0 %v661
    %679 = vmatpush.bf16.msra.mxu0 %v660
    %680 = vmatpush.bf16.msra.mxu0 %v659
    %681 = vmatpush.bf16.msra.mxu0 %v658
    %682 = vmatmul.bf16.gmra.mxu0 %v624
    %v683 = vpop.f32.mrf.mxu0
    %v684 = vadd.f32 0.0, %v683
    %v685 = vpop.f32.mrf.mxu0
    %v686 = vadd.f32 0.0, %v685
    %687 = vdwg.mxu0
    %v688 = vadd.f32 %v583, %v684
    %v689 = vadd.f32 %v585, %v686
    %v690 = vperm.slane %v100, 0
    %v691 = vmul.f32 %v688, %v690
    %v692 = vmul.f32 %v689, %v690
    %v693 = vperm.slane %v101, 0
    %v694 = vadd.f32 %v691, %v693
    %v695 = vadd.f32 %v692, %v693
    %v696 = vld [vmem:[#allocation11 + $0x4] sm:$0x1]
    %v697 = vld [vmem:[#allocation11 + $0x5] sm:$0x1]
    %v698 = vld [vmem:[#allocation9] sm:$0xf]
    %v699 = vld [vmem:[#allocation9 + $0x4] sm:$0xf]
    %v700 = vld [vmem:[#allocation9 + $0x8] sm:$0xf]
    %v701 = vld [vmem:[#allocation9 + $0xc] sm:$0xf]
    %v702 = vld [vmem:[#allocation9 + $0x10] sm:$0xf]
    %v703 = vld [vmem:[#allocation9 + $0x14] sm:$0xf]
    %v704 = vld [vmem:[#allocation9 + $0x18] sm:$0xf]
    %v705 = vld [vmem:[#allocation9 + $0x1c] sm:$0xf]
    %v706 = vld [vmem:[#allocation9 + $0x20] sm:$0xf]
    %v707 = vld [vmem:[#allocation9 + $0x24] sm:$0xf]
    %v708 = vld [vmem:[#allocation9 + $0x28] sm:$0xf]
    %v709 = vld [vmem:[#allocation9 + $0x2c] sm:$0xf]
    %v710 = vld [vmem:[#allocation9 + $0x30] sm:$0xf]
    %v711 = vld [vmem:[#allocation9 + $0x34] sm:$0xf]
    %v712 = vld [vmem:[#allocation9 + $0x38] sm:$0xf]
    %v713 = vld [vmem:[#allocation9 + $0x3c] sm:$0xf]
    %v730 = vunpack.c.l.b16 %v698
    %v731 = vunpack.c.l.b16 %v699
    %v732 = vunpack.c.l.b16 %v700
    %v733 = vunpack.c.l.b16 %v701
    %v734 = vunpack.c.l.b16 %v702
    %v735 = vunpack.c.l.b16 %v703
    %v736 = vunpack.c.l.b16 %v704
    %v737 = vunpack.c.l.b16 %v705
    %v738 = vunpack.c.l.b16 %v706
    %v739 = vunpack.c.l.b16 %v707
    %v740 = vunpack.c.l.b16 %v708
    %v741 = vunpack.c.l.b16 %v709
    %v742 = vunpack.c.l.b16 %v710
    %v743 = vunpack.c.l.b16 %v711
    %v744 = vunpack.c.l.b16 %v712
    %v745 = vunpack.c.l.b16 %v713
    %v746 = vpack.c.b16 %v731, %v730
    %v747 = vpack.c.b16 %v733, %v732
    %v748 = vpack.c.b16 %v735, %v734
    %v749 = vpack.c.b16 %v737, %v736
    %v750 = vpack.c.b16 %v739, %v738
    %v751 = vpack.c.b16 %v741, %v740
    %v752 = vpack.c.b16 %v743, %v742
    %v753 = vpack.c.b16 %v745, %v744
    %762 = vmatpush.bf16.msra.mxu0 %v753
    %763 = vmatpush.bf16.msra.mxu0 %v752
    %764 = vmatpush.bf16.msra.mxu0 %v751
    %765 = vmatpush.bf16.msra.mxu0 %v750
    %766 = vmatpush.bf16.msra.mxu0 %v749
    %767 = vmatpush.bf16.msra.mxu0 %v748
    %768 = vmatpush.bf16.msra.mxu0 %v747
    %769 = vmatpush.bf16.msra.mxu0 %v746
    %770 = vmatmul.bf16.gmra.mxu0 %v165
    %v771 = vpop.f32.mrf.mxu0
    %v772 = vadd.f32 0.0, %v771
    %v773 = vpop.f32.mrf.mxu0
    %v774 = vadd.f32 0.0, %v773
    %775 = vdwg.mxu0
    %v776 = vperm.slane %v696, 0
    %v777 = vmul.f32 %v772, %v776
    %v778 = vmul.f32 %v774, %v776
    %v779 = vperm.slane %v697, 0
    %v780 = vadd.f32 %v777, %v779
    %v781 = vadd.f32 %v778, %v779
    %v782 = vadd.f32 %v694, %v780
    %v783 = vadd.f32 %v695, %v781
    %v784 = vmax.f32 %v782, 0.0
    %v785 = vmax.f32 %v783, 0.0
    %v786 = vpack.c.bf16 %v784, %v784
    %v787 = vpack.c.bf16 %v785, %v785
    %788 = vst [vmem:[#allocation12] sm:$0xf] %v786
    %789 = vst [vmem:[#allocation12 + $0x4] sm:$0xf] %v787
    // Predicated region
    $region42: #{tpu_custom_call.1} parent=1 // pred_check
      _
    $region43: #{tpu_custom_call.1} parent=1 // pred_check_branch
      %791 = sbr.rel (0) target = $region45
    $region44: #{tpu_custom_call.1} parent=1 // pred_region
      %793 = vsyncadd [#allocation5], 0
      %s794 = sshll.u32 [#allocation12], 4
      %s795 = int_to_ptr.vmem [resolvable:$true] %s794
      %s796 = sshll.u32 %s5, 4
      %s797 = int_to_ptr.hbm [resolvable:$true] %s796
      %802 = dma.vmem_to_hbm [thread:$0]  %s795, 128, %s797, [#allocation5], 64, 64, 4
    $region45: #{tpu_custom_call.1} parent=1 // pred_fallthru
      _
    // Predicated region
    $region46: #{tpu_custom_call.1} parent=1 // pred_check
      _
    $region47: #{tpu_custom_call.1} parent=1 // pred_check_branch
      %804 = sbr.rel (0) target = $region49
    $region48: #{tpu_custom_call.1} parent=1 // pred_region
      %806 = dma.done [#allocation5], 128
    $region49: #{tpu_custom_call.1} parent=1 // pred_fallthru
      _
    %807 = vsyncpa [#allocation4], 1
    %808 = vsyncpa [#allocation7], 1
    %809 = vsyncpa [#allocation10], 1
    %810 = vsyncpa [#allocation5], 1

</llo_original>
